<compile_context>
chip_gen: v6e
topology: v6e:2x2x1
jax: 0.10.0
libtpu: 0.0.40
codegen_flags: <defaults>
</compile_context>

<pallas_src>
import numpy as np

import jax
import jax.numpy as jnp
from jax.experimental import pallas as pl
from jax.experimental.pallas import tpu as pltpu


def _gaussian_max_logprob_kernel(xT_ref, w_ref, consts_ref, out_ref):
    """xT_ref    : (D, TM) tile of queries (features on sublanes, queries on lanes)
       w_ref     : (C, D)  class means pre-scaled by 1/sigma_i        (resident)
       consts_ref: (C, 2)  col 0 = -0.5/sigma_i
                           col 1 = -0.5*||mu_i||^2/sigma_i - d/2*log(2*pi*sigma_i)
       out_ref   : (1, TM) max_i lnp[i, b]  (lane-dense, unmasked store)"""
    x = xT_ref[...]                                                # (D, TM) f32
    w = w_ref[...]                                                 # (C, D)
    consts = consts_ref[...]                                       # (C, 2)

    x_sq = jnp.sum(x * x, axis=0, keepdims=True)                   # (1, TM)  XLU
    cross = jnp.dot(w, x, preferred_element_type=jnp.float32)      # (C, TM)  MXU
    lnp = cross + consts[:, 0:1] * x_sq + consts[:, 1:2]           # (C, TM)  VPU
    out_ref[...] = jnp.max(lnp, axis=0, keepdims=True)             # (1, TM)


def gaussian_forward(X, scaled_means, consts, tm=128):
    """X: (M, D) queries.  scaled_means: (C, D) = means / sigma[:, None].
       consts: (C, 2) fused per-class constants.  Returns (M,) max log-prob."""
    X = jnp.asarray(X, jnp.float32)
    m, d = X.shape
    c = scaled_means.shape[0]
    m_pad = pl.cdiv(m, tm) * tm
    # Layout plumbing (not compute hoisting): present queries lane-dense as X^T.
    xT = jnp.zeros((d, m_pad), jnp.float32).at[:, :m].set(X.T)

    out = pl.pallas_call(
        _gaussian_max_logprob_kernel,
        out_shape=jax.ShapeDtypeStruct((1, m_pad), jnp.float32),
        grid=(m_pad // tm,),
        in_specs=[pl.BlockSpec((d, tm), lambda i: (0, i)),     # query tile
                  pl.BlockSpec((c, d), lambda i: (0, 0)),      # resident params
                  pl.BlockSpec((c, 2), lambda i: (0, 0))],     # resident consts
        out_specs=pl.BlockSpec((1, tm), lambda i: (0, i)),
        compiler_params=pltpu.CompilerParams(
            dimension_semantics=("parallel",)),
    )(xT, scaled_means, consts)
    return out[0, :m]


class GaussianPallas:
    """JAX/Pallas equivalent of the torch Gaussian module (after train())."""

    def __init__(self):
        self.means = None     # (C, D)
        self.sigmas = None    # (C,)
        self.d = 1
        self._scaled_means = None
        self._consts = None

    def set_params(self, means, sigmas):
        means = jnp.asarray(means, jnp.float32)
        sigmas = jnp.asarray(sigmas, jnp.float32)
        self.means, self.sigmas = means, sigmas
        self.d = means.shape[1]
        # Hoisted, computed once (not per forward / per tile):
        inv_sigma = 1.0 / sigmas                                     # (C,)
        coefs = self.d * 0.5 * jnp.log(2.0 * jnp.pi * sigmas)        # (C,)
        m_sq = jnp.sum(means * means, axis=1)                        # (C,)
        self._scaled_means = means * inv_sigma[:, None]              # (C, D)
        self._consts = jnp.stack(
            [-0.5 * inv_sigma, -0.5 * inv_sigma * m_sq - coefs], axis=1)  # (C, 2)

    def train(self, train_points, train_word_labels):
        # Host-side numpy parameter fitting, mirrors the torch module's train().
        train_points = np.asarray(train_points, np.float32)
        train_word_labels = np.asarray(train_word_labels, np.float32)
        centers = np.unique(train_word_labels, axis=0)
        d = centers.shape[1]
        dists = np.mean((train_points - train_word_labels) ** 2, axis=1)
        means, sigmas = [], []
        for center in centers:
            means.append(center)
            inds = np.sum(train_word_labels == center, axis=1) == d
            sigmas.append(np.mean(dists[inds]))
        self.set_params(np.array(means), np.array(sigmas))

    def forward(self, X, tm=128):
        return gaussian_forward(X, self._scaled_means, self._consts, tm=tm)


def gaussian_reference(X, means, sigmas, d):
    """Pure-JAX transcription of the torch forward (for verification)."""
    X = jnp.asarray(X, jnp.float32)
    means = jnp.asarray(means, jnp.float32)        # (C, D)
    sigmas = jnp.asarray(sigmas, jnp.float32)      # (C,)
    coefs = d * 0.5 * jnp.log(2.0 * jnp.pi * sigmas)
    diff = X[:, None, :] - means[None, :, :]                        # (B, C, D)
    p_i = jnp.sum(diff * diff, axis=2) / sigmas[None, :]            # (B, C)
    lnp = -0.5 * p_i - coefs[None, :]
    return jnp.max(lnp, axis=1)                                     # (B,)


if __name__ == "__main__":
    key = jax.random.PRNGKey(0)
    k_centers, k_assign, k_noise, k_x = jax.random.split(key, 4)

    C, D, N, B = 4, 16, 64, 8

    centers = jax.random.normal(k_centers, (C, D), dtype=jnp.float32) * 3.0
    assign = jax.random.randint(k_assign, (N,), 0, C)
    labels = centers[assign]                                         # (N, D)
    noise = jax.random.normal(k_noise, (N, D), dtype=jnp.float32) * 0.5
    train_points = labels + noise
    X = jax.random.normal(k_x, (B, D), dtype=jnp.float32) * 3.0

    model = GaussianPallas()
    model.train(np.asarray(train_points), np.asarray(labels))

    out = jax.block_until_ready(model.forward(X))
    ref = jax.block_until_ready(
        gaussian_reference(X, model.means, model.sigmas, model.d))

    assert out.shape == (B,)
    assert jnp.allclose(out, ref, rtol=1e-3, atol=1e-2), (out, ref)

    # TODO(synk): find_thresholds() (host-side sort + percentile pick) is left to
    # plain JAX/numpy; it is not part of the forward pass.
    print("KERNEL_OK")
</pallas_src>

<mosaic_0001>
module attributes {stable_mosaic.version = 11 : i64} {
  func.func @_gaussian_max_logprob_kernel(%arg0: i32, %arg1: memref<16x128xf32, #tpu.memory_space<vmem>>, %arg2: memref<4x16xf32, #tpu.memory_space<vmem>>, %arg3: memref<4x2xf32, #tpu.memory_space<vmem>>, %arg4: memref<1x128xf32, #tpu.memory_space<vmem>>) attributes {dimension_semantics = [#tpu.dimension_semantics<parallel>], iteration_bounds = array<i64: 1>, scalar_prefetch = 0 : i64, scratch_operands = 0 : i64, tpu.core_type = #tpu.core_type<tc>, window_params = [{transform_indices = @transform_0, window_bounds = array<i64: 16, 128>}, {pipeline_mode = #tpu.pipeline_mode<synchronous>, transform_indices = @transform_1, window_bounds = array<i64: 4, 16>}, {pipeline_mode = #tpu.pipeline_mode<synchronous>, transform_indices = @transform_2, window_bounds = array<i64: 4, 2>}, {transform_indices = @transform_3, window_bounds = array<i64: 1, 128>}]} {
    %c0 = arith.constant 0 : index
    %c0_0 = arith.constant 0 : index
    %0 = vector.load %arg1[%c0, %c0_0] : memref<16x128xf32, #tpu.memory_space<vmem>>, vector<16x128xf32>
    %c0_1 = arith.constant 0 : index
    %c0_2 = arith.constant 0 : index
    %1 = vector.load %arg2[%c0_1, %c0_2] : memref<4x16xf32, #tpu.memory_space<vmem>>, vector<4x16xf32>
    %c0_3 = arith.constant 0 : index
    %c0_4 = arith.constant 0 : index
    %2 = vector.load %arg3[%c0_3, %c0_4] : memref<4x2xf32, #tpu.memory_space<vmem>>, vector<4x2xf32>
    %3 = arith.mulf %0, %0 : vector<16x128xf32>
    %cst = arith.constant dense<0.000000e+00> : vector<128xf32>
    %4 = vector.multi_reduction <add>, %3, %cst [0] : vector<16x128xf32> to vector<128xf32>
    %5 = vector.shape_cast %4 : vector<128xf32> to vector<1x128xf32>
    %cst_5 = arith.constant dense<0.000000e+00> : vector<4x128xf32>
    %6 = tpu.matmul %1, %0, %cst_5 {dimension_numbers = #tpu.dot_dimension_numbers<[1], [0], [0], [1], [0, 0, 1, 1], [], []>} : vector<4x16xf32>, vector<16x128xf32>, vector<4x128xf32> -> vector<4x128xf32>
    %7 = vector.extract_strided_slice %2 {offsets = [0, 0], sizes = [4, 1], strides = [1, 1]} : vector<4x2xf32> to vector<4x1xf32>
    %8 = vector.broadcast %7 : vector<4x1xf32> to vector<4x128xf32>
    %9 = vector.broadcast %5 : vector<1x128xf32> to vector<4x128xf32>
    %10 = arith.mulf %8, %9 : vector<4x128xf32>
    %11 = arith.addf %6, %10 : vector<4x128xf32>
    %12 = vector.extract_strided_slice %2 {offsets = [0, 1], sizes = [4, 1], strides = [1, 1]} : vector<4x2xf32> to vector<4x1xf32>
    %13 = vector.broadcast %12 : vector<4x1xf32> to vector<4x128xf32>
    %14 = arith.addf %11, %13 : vector<4x128xf32>
    %cst_6 = arith.constant dense<0xFF800000> : vector<128xf32>
    %15 = vector.multi_reduction <maximumf>, %14, %cst_6 [0] : vector<4x128xf32> to vector<128xf32>
    %16 = vector.shape_cast %15 : vector<128xf32> to vector<1x128xf32>
    %c0_7 = arith.constant 0 : index
    %c0_8 = arith.constant 0 : index
    %17 = vector.load %arg4[%c0_7, %c0_8] : memref<1x128xf32, #tpu.memory_space<vmem>>, vector<1x128xf32>
    tpu.vector_store %arg4[%c0_7, %c0_8], %16 {strides = array<i32>} : memref<1x128xf32, #tpu.memory_space<vmem>>, vector<1x128xf32>,
    return
  }
  func.func @transform_0(%arg0: i32) -> (i32, i32) {
    %c0_i32 = arith.constant 0 : i32
    %c0_i32_0 = arith.constant 0 : i32
    return %c0_i32, %arg0 : i32, i32
  }
  func.func @transform_1(%arg0: i32) -> (i32, i32) {
    %c0_i32 = arith.constant 0 : i32
    %c0_i32_0 = arith.constant 0 : i32
    %c0_i32_1 = arith.constant 0 : i32
    return %c0_i32, %c0_i32_0 : i32, i32
  }
  func.func @transform_2(%arg0: i32) -> (i32, i32) {
    %c0_i32 = arith.constant 0 : i32
    %c0_i32_0 = arith.constant 0 : i32
    %c0_i32_1 = arith.constant 0 : i32
    return %c0_i32, %c0_i32_0 : i32, i32
  }
  func.func @transform_3(%arg0: i32) -> (i32, i32) {
    %c0_i32 = arith.constant 0 : i32
    %c0_i32_0 = arith.constant 0 : i32
    return %c0_i32, %arg0 : i32, i32
  }
}

</mosaic_0001>

<llo_original>
// kernel: tpu_custom_call.1
$region0: #{tpu_custom_call.1}
  #allocation0 [shape = 'u32[]', space=smem, size = 0x4, offset = 0x4, fixed_abs, tag = 'smem constant byte address 0x4 - core index']
  #allocation1 [shape = 'u32[144,128]{1,0:T(1,128)}', space=vmem, size = 0x12000, scoped, tag = 'internal scratch']
  %s0 = inlined_call_operand.hbm [shape: f32[16,128], index: 0, kind: input, shape index: {}]
  %s1 = inlined_call_operand.vmem [shape: f32[4,16], index: 1, kind: input, shape index: {}]
  %s2 = inlined_call_operand.vmem [shape: f32[4,2], index: 2, kind: input, shape index: {}]
  %s3 = inlined_call_operand.hbm [shape: f32[1,128], index: 3, kind: output, shape index: {}]
  %s4 = sld [smem:[#allocation0]]
  $region26: #{tpu_custom_call.1} parent=0
    _
  %s6 = ssub.s32 1, %s4
  %s7 = scalar_select 0, %s6, %s4
  $region1: #{tpu_custom_call.1} parent=0
    #allocation2 [shape = 'u8[8192]{0}', space=vmem, size = 0x2000, scoped, tag = 'input window, operand 0, single buffered']
    #allocation3 [shape = 's32[1]{0}', space=sflag, size = 0x4, scoped, tag = 'scoped memory for tpu_custom_call.1']
    #allocation4 [shape = 's32[1]{0}', space=sflag, size = 0x4, scoped, tag = 'scoped memory for tpu_custom_call.1']
    #allocation5 [shape = 'u8[512]{0}', space=vmem, size = 0x400, scoped, tag = 'output window, operand 0, single buffered']
    %8 = vsyncpa [#allocation3], 0
    %9 = vsyncpa [#allocation4], 0
    // Predicated region
    $region2: #{tpu_custom_call.1} parent=1 // pred_check
      _
    $region3: #{tpu_custom_call.1} parent=1 // pred_check_branch
      %11 = sbr.rel (0) target = $region5
    $region4: #{tpu_custom_call.1} parent=1 // pred_region
      %s13 = ssub.s32 256, 256
      %14 = vsyncadd [#allocation3], %s13
      %s15 = sshll.u32 [#allocation2], 4
      %s16 = int_to_ptr.vmem [resolvable:$true] %s15
      %21 = dma.hbm_to_vmem [thread:$0]  %s0, 256, %s16, [#allocation3], 128, 128, 8
    $region5: #{tpu_custom_call.1} parent=1 // pred_fallthru
      _
    // Predicated region
    $region6: #{tpu_custom_call.1} parent=1 // pred_check
      _
    $region7: #{tpu_custom_call.1} parent=1 // pred_check_branch
      %23 = sbr.rel (0) target = $region9
    $region8: #{tpu_custom_call.1} parent=1 // pred_region
      _
    $region9: #{tpu_custom_call.1} parent=1 // pred_fallthru
      _
    // Predicated region
    $region10: #{tpu_custom_call.1} parent=1 // pred_check
      _
    $region11: #{tpu_custom_call.1} parent=1 // pred_check_branch
      %25 = sbr.rel (0) target = $region13
    $region12: #{tpu_custom_call.1} parent=1 // pred_region
      _
    $region13: #{tpu_custom_call.1} parent=1 // pred_fallthru
      _
    // Predicated region
    $region14: #{tpu_custom_call.1} parent=1 // pred_check
      _
    $region15: #{tpu_custom_call.1} parent=1 // pred_check_branch
      %27 = sbr.rel (0) target = $region17
    $region16: #{tpu_custom_call.1} parent=1 // pred_region
      %28 = dma.done [#allocation3], 256
    $region17: #{tpu_custom_call.1} parent=1 // pred_fallthru
      _
    %v29 = vld [vmem:[#allocation2] sm:$0xff]
    %v30 = vld [vmem:[#allocation2 + $0x8] sm:$0xff]
    %v31 = vld [vmem:[%s1] sm:$0xf]
    %v32 = vld [vmem:[%s2] sm:$0xf]
    %v33 = vmul.f32 %v29, %v29
    %v34 = vmul.f32 %v30, %v30
    %v35 = vadd.f32 %v33, %v34
    %v36 = vrot.slane %v35, 4
    %v37 = vadd.f32 %v35, %v36
    %v38 = vrot.slane %v37, 2
    %v39 = vadd.f32 %v37, %v38
    %v40 = vrot.slane %v39, 1
    %v41 = vadd.f32 %v39, %v40
    %43 = vset.pattern.permute.xlu0 0
    %44 = vperm.xlu0 %43, %v32
    %v45 = vpop.permute.xlu0 %44
    %v47 = vmul.f32 %v45, %v41
    %vm48 = vcmask 130048
    %v50 = vsel %vm48, %v31, 0
    %52 = vmatprep.subr.mxu0 0.0
    %53 = vmatpush1.msra.mxu0 0.0
    %54 = vmatprep.subr.mxu0 0.0
    %55 = vmatpush1.msra.mxu0 0.0
    %56 = vmatprep.subr.mxu0 0.0
    %57 = vmatpush1.msra.mxu0 0.0
    %58 = vmatprep.subr.mxu0 0.0
    %59 = vmatpush1.msra.mxu0 0.0
    %60 = vmatprep.subr.mxu0 0.0
    %61 = vmatpush1.msra.mxu0 0.0
    %62 = vmatprep.subr.mxu0 0.0
    %63 = vmatpush1.msra.mxu0 0.0
    %64 = vmatprep.subr.mxu0 0.0
    %65 = vmatpush1.msra.mxu0 0.0
    %66 = vmatprep.subr.mxu0 0.0
    %67 = vmatpush1.msra.mxu0 0.0
    %68 = vmatprep.subr.mxu0 0.0
    %69 = vmatpush1.msra.mxu0 0.0
    %70 = vmatprep.subr.mxu0 0.0
    %71 = vmatpush1.msra.mxu0 0.0
    %72 = vmatprep.subr.mxu0 0.0
    %73 = vmatpush1.msra.mxu0 0.0
    %74 = vmatprep.subr.mxu0 0.0
    %75 = vmatpush1.msra.mxu0 0.0
    %76 = vmatprep.subr.mxu0 0.0
    %77 = vmatpush1.msra.mxu0 0.0
    %78 = vmatprep.subr.mxu0 0.0
    %79 = vmatpush1.msra.mxu0 0.0
    %80 = vmatprep.subr.mxu0 0.0
    %81 = vmatpush1.msra.mxu0 %v30
    %82 = vmatprep.subr.mxu0 0.0
    %83 = vmatpush1.msra.mxu0 %v29
    %84 = vmatprep.subr.mxu0 0.0
    %85 = vmatpush2.msra.mxu0 0.0
    %86 = vmatprep.subr.mxu0 0.0
    %87 = vmatpush2.msra.mxu0 0.0
    %88 = vmatprep.subr.mxu0 0.0
    %89 = vmatpush2.msra.mxu0 0.0
    %90 = vmatprep.subr.mxu0 0.0
    %91 = vmatpush2.msra.mxu0 0.0
    %92 = vmatprep.subr.mxu0 0.0
    %93 = vmatpush2.msra.mxu0 0.0
    %94 = vmatprep.subr.mxu0 0.0
    %95 = vmatpush2.msra.mxu0 0.0
    %96 = vmatprep.subr.mxu0 0.0
    %97 = vmatpush2.msra.mxu0 0.0
    %98 = vmatprep.subr.mxu0 0.0
    %99 = vmatpush2.msra.mxu0 0.0
    %100 = vmatprep.subr.mxu0 0.0
    %101 = vmatpush2.msra.mxu0 0.0
    %102 = vmatprep.subr.mxu0 0.0
    %103 = vmatpush2.msra.mxu0 0.0
    %104 = vmatprep.subr.mxu0 0.0
    %105 = vmatpush2.msra.mxu0 0.0
    %106 = vmatprep.subr.mxu0 0.0
    %107 = vmatpush2.msra.mxu0 0.0
    %108 = vmatprep.subr.mxu0 0.0
    %109 = vmatpush2.msra.mxu0 0.0
    %110 = vmatprep.subr.mxu0 0.0
    %111 = vmatpush2.msra.mxu0 0.0
    %112 = vmatprep.subr.mxu0 0.0
    %113 = vmatpush2.msra.mxu0 0.0
    %114 = vmatprep.subr.mxu0 0.0
    %115 = vmatpush2.msra.mxu0 0.0
    %116 = vmatprep.mubr.f32.mxu0 0.0
    %117 = vmatmul.mubr.f32.gmra.mxu0 %v50
    %v118 = vpop.f32.mrf.mxu0
    %v119 = vadd.f32 %v47, %v118
    %v120 = vpop.f32.mrf.mxu0
    %121 = vdwg.mxu0
    %122 = vset.pattern.permute.xlu0 1
    %123 = vperm.xlu0 %122, %v32
    %v124 = vpop.permute.xlu0 %123
    %v126 = vadd.f32 %v119, %v124
    %vm127 = vcmask 1043456
    %v128 = vsel %vm127, %v126, -inf
    %v129 = vrot.slane %v128, 4
    %v130 = vmax.f32 %v128, %v129
    %v131 = vrot.slane %v130, 2
    %v132 = vmax.f32 %v130, %v131
    %v133 = vrot.slane %v132, 1
    %v134 = vmax.f32 %v132, %v133
    %135 = vst [vmem:[#allocation5] sm:$0x1] %v134
    // Predicated region
    $region18: #{tpu_custom_call.1} parent=1 // pred_check
      _
    $region19: #{tpu_custom_call.1} parent=1 // pred_check_branch
      %137 = sbr.rel (0) target = $region21
    $region20: #{tpu_custom_call.1} parent=1 // pred_region
      %s139 = ssub.s32 16, 16
      %140 = vsyncadd [#allocation4], %s139
      %s142 = sshll.u32 [#allocation5], 4
      %s143 = int_to_ptr.vmem [resolvable:$true] %s142
      %145 = dma.vmem_to_hbm [thread:$0]  %s143, 16, %s3, [#allocation4]
    $region21: #{tpu_custom_call.1} parent=1 // pred_fallthru
      _
    // Predicated region
    $region22: #{tpu_custom_call.1} parent=1 // pred_check
      _
    $region23: #{tpu_custom_call.1} parent=1 // pred_check_branch
      %147 = sbr.rel (0) target = $region25
    $region24: #{tpu_custom_call.1} parent=1 // pred_region
      %148 = dma.done [#allocation4], 16
    $region25: #{tpu_custom_call.1} parent=1 // pred_fallthru
      _
    %149 = vsyncpa [#allocation3], 1
    %150 = vsyncpa [#allocation4], 1

</llo_original>
